<compile_context>
chip_gen: v7x
topology: tpu7x:2x2x1
jax: 0.10.0
libtpu: 0.0.40
codegen_flags: <defaults>
</compile_context>

<pallas_src>
import functools

import jax
import jax.numpy as jnp
from jax.experimental import pallas as pl
from jax.experimental.pallas import tpu as pltpu


def _round_up(x, m):
    return ((x + m - 1) // m) * m


def _gram_kernel(degrees, lp, tk, compute_dtype,
                 betas_ref, x_ref, w_ref, o_ref, basis_ref):
    """One (tb, to) output tile; K = (degrees+1)*L is the reduction axis.

    betas_ref: (degrees+1,) f32 SMEM  betas_ref[n] = beta(n, n+1)*beta_weights[n]
    x_ref:     (tb, lp)      f32 VMEM (full L, resident per B-tile)
    w_ref:     (tk, to)      bf16 VMEM (pre-flattened, degree-major K rows)
    o_ref:     (tb, to)      f32 VMEM (resident across the K axis)
    basis_ref: (tb, Kp)      bf16 VMEM scratch (built once per B-tile)
    """
    oi = pl.program_id(1)
    ki = pl.program_id(2)

    # Build the bf16 Gram basis for this B-tile once, on the tile's first grid
    # step; it is reused across every O-tile and K-tile of the same B-tile.
    @pl.when(jnp.logical_and(oi == 0, ki == 0))
    def _():
        t = jnp.tanh(x_ref[...].astype(jnp.float32)).astype(compute_dtype)
        p0 = jnp.ones_like(t)
        basis_ref[:, 0:lp] = p0.astype(basis_ref.dtype)
        if degrees >= 1:
            p1 = t
            basis_ref[:, lp:2 * lp] = p1.astype(basis_ref.dtype)
            for d in range(2, degrees + 1):
                b = betas_ref[d - 1].astype(compute_dtype)
                p2 = t * p1 - b * p0
                basis_ref[:, d * lp:(d + 1) * lp] = p2.astype(basis_ref.dtype)
                p0, p1 = p1, p2

    # Accumulate directly into the resident output block (no acc scratch).
    @pl.when(ki == 0)
    def _():
        o_ref[...] = jnp.zeros_like(o_ref)

    if basis_ref.shape[1] == tk:          # single K step: whole basis slab
        basis = basis_ref[...]
    else:                                 # tk is a 128-multiple dividing Kp
        start = pl.multiple_of(ki * tk, tk)
        basis = basis_ref[:, pl.ds(start, tk)]
    o_ref[...] += jnp.dot(basis, w_ref[...], preferred_element_type=jnp.float32)


def pack_gram_params(basis_weights, beta_weights, degrees=3,
                     block_o=512, block_k=1024):
    """One-time parameter packing (do NOT call per forward pass).

    basis_weights: (L, O, degrees+1) f32  (PyTorch layout)
    beta_weights:  (degrees+1,)      f32
    """
    L, O, d1 = basis_weights.shape
    assert d1 == degrees + 1

    # Fold beta(n, n+1) (GRAMLayer.beta with m = n + 1) with beta_weights.
    ns = jnp.arange(degrees + 1, dtype=jnp.float32)
    ms = ns + 1.0
    coeff = (ms + ns) * (ms - ns) * ns ** 2 / (ms ** 2 / (4.0 * ns ** 2 - 1.0))
    betas = (coeff * beta_weights.astype(jnp.float32)).astype(jnp.float32)

    # K layout: k = d * Lp + l (degree-major).  Small layers keep full-extent
    # blocks (no padding of L/K up to 128); big layers tile K in 128-multiples.
    if (degrees + 1) * L <= block_k:
        lp, tk = L, (degrees + 1) * L                 # single K step
    else:
        lp = _round_up(L, 128)
        tk = 128
        cand = 256
        while cand <= min(lp, block_k):               # largest 128-multiple
            if lp % cand == 0:                        # divisor of lp
                tk = cand
            cand += 128
    kp = (degrees + 1) * lp

    if O <= block_o:
        to, op = O, O                                 # full-extent O block
    else:
        to = max(128, (block_o // 128) * 128)
        op = _round_up(O, to)

    # (L, O, D+1) -> (D+1, L, O) -> zero-pad -> flatten to (Kp, Op) bf16.
    # Zero padding is required for correctness (padded basis columns != 0).
    w = jnp.transpose(basis_weights.astype(jnp.float32), (2, 0, 1))
    w = jnp.pad(w, ((0, 0), (0, lp - L), (0, op - O)))
    w = w.reshape(kp, op).astype(jnp.bfloat16)

    return dict(w=w, betas=betas, degrees=degrees,
                L=L, O=O, lp=lp, kp=kp, op=op, tk=tk, to=to)


def gram_layer_forward(x, packed, block_b=512, compute_dtype=jnp.float32,
                       vmem_budget_bytes=12 * 1024 * 1024):
    """Pallas GRAMLayer.forward.  x: (B, L) -> (B, O) float32.

    compute_dtype=float32 is safe on all generations; bfloat16 halves VPU/EUP
    work on v6e/v7x (matmul operands are bf16 either way).
    """
    degrees = packed["degrees"]
    L, O = packed["L"], packed["O"]
    lp, kp, op = packed["lp"], packed["kp"], packed["op"]
    tk, to = packed["tk"], packed["to"]
    w, betas = packed["w"], packed["betas"]

    B = x.shape[0]
    assert x.shape[1] == L

    # Pick the largest B tile whose double-buffered x/W/out blocks plus the
    # per-tile basis scratch stay within the default scoped-VMEM budget of
    # every generation (v5e's 16 MiB is the tightest default).
    tb = min(block_b, _round_up(B, 8))

    def vmem_bytes(tb_):
        return (tb_ * kp * 2            # basis scratch (bf16)
                + 2 * tb_ * lp * 4      # x (double-buffered)
                + 2 * tk * to * 2       # weights (double-buffered)
                + 2 * tb_ * to * 4)     # output (double-buffered)

    while tb > 8 and vmem_bytes(tb) > vmem_budget_bytes:
        tb = max(8, tb // 2)

    bp = _round_up(B, tb)
    xp = x.astype(jnp.float32)
    if (bp, lp) != (B, L):
        xp = jnp.pad(xp, ((0, bp - B), (0, lp - L)))

    nb, no, nk = bp // tb, op // to, kp // tk
    kernel = functools.partial(_gram_kernel, degrees, lp, tk, compute_dtype)

    out = pl.pallas_call(
        kernel,
        out_shape=jax.ShapeDtypeStruct((bp, op), jnp.float32),
        grid_spec=pltpu.PrefetchScalarGridSpec(
            num_scalar_prefetch=0,
            grid=(nb, no, nk),
            in_specs=[
                pl.BlockSpec(memory_space=pltpu.MemorySpace.SMEM),       # betas
                pl.BlockSpec((tb, lp), lambda bi, oi, ki: (bi, 0)),      # x
                pl.BlockSpec((tk, to), lambda bi, oi, ki: (ki, oi)),     # W2
            ],
            out_specs=pl.BlockSpec((tb, to), lambda bi, oi, ki: (bi, oi)),
            scratch_shapes=[pltpu.VMEM((tb, kp), jnp.bfloat16)],         # basis
        ),
        # Only the B axis is "parallel": the basis scratch built at a B-tile's
        # first (oi, ki) step is reused across oi/ki, so those axes must stay
        # sequential ("arbitrary").  Megacore still shards over B-tiles.
        compiler_params=pltpu.CompilerParams(
            dimension_semantics=("parallel", "arbitrary", "arbitrary")),
        cost_estimate=pl.CostEstimate(
            flops=2 * bp * kp * op,
            transcendentals=bp * lp,
            bytes_accessed=int(bp * lp * 4            # x: once per B-tile
                               + nb * kp * op * 2     # W2: re-streamed nb times
                               + bp * op * 4),        # output
        ),
    )(betas, xp, w)

    # y.view(-1, out_channels) is a no-op for 2-D input; strip padding.
    return out[:B, :O]


def _reference_forward(x, basis_weights, beta_weights, degrees=3,
                       matmul_dtype=jnp.float32):
    """Pure-JAX reference mirroring the PyTorch semantics."""
    t = jnp.tanh(x.astype(jnp.float32))
    p0 = jnp.ones_like(t)
    basis = [p0]
    if degrees >= 1:
        p1 = t
        basis.append(p1)
        for i in range(2, degrees + 1):
            n, m = float(i - 1), float(i)
            b = (m + n) * (m - n) * n ** 2 / (m ** 2 / (4.0 * n ** 2 - 1.0)) \
                * beta_weights[i - 1]
            p2 = t * p1 - b * p0
            basis.append(p2)
            p0, p1 = p1, p2
    basis = jnp.stack(basis, axis=-1)                      # (B, L, D+1)
    basis = basis.astype(matmul_dtype).astype(jnp.float32)
    wref = basis_weights.astype(matmul_dtype).astype(jnp.float32)
    return jnp.einsum('bld,lod->bo', basis, wref,
                      precision=jax.lax.Precision.HIGHEST)


if __name__ == "__main__":
    batch = 8
    in_channels = 16
    out_channels = 32
    degrees = 3

    key = jax.random.PRNGKey(0)
    k_beta, k_basis, k_x = jax.random.split(key, 3)

    # Deterministic init mirroring GRAMLayer.init_weights():
    beta_weights = jax.random.normal(k_beta, (degrees + 1,), dtype=jnp.float32) * (
        1.0 / (in_channels * (degrees + 1.0)))
    fan_in = out_channels * (degrees + 1)
    fan_out = in_channels * (degrees + 1)
    bound = (6.0 / (fan_in + fan_out)) ** 0.5
    basis_weights = jax.random.uniform(
        k_basis, (in_channels, out_channels, degrees + 1),
        minval=-bound, maxval=bound, dtype=jnp.float32)
    x = jax.random.normal(k_x, (batch, in_channels), dtype=jnp.float32)

    packed = pack_gram_params(basis_weights, beta_weights, degrees)   # one-time
    y = gram_layer_forward(x, packed)
    y = jax.block_until_ready(y)
    assert y.shape == (batch, out_channels)

    # Reference with bf16-rounded matmul operands (matches kernel precision):
    y_bf16_ref = _reference_forward(x, basis_weights, beta_weights, degrees,
                                    matmul_dtype=jnp.bfloat16)
    assert jnp.allclose(y, y_bf16_ref, atol=2e-3, rtol=2e-3), \
        "mismatch vs bf16-matched reference"

    # Full-f32 reference (loose tolerance accounts for bf16 operand rounding):
    y_f32_ref = _reference_forward(x, basis_weights, beta_weights, degrees)
    assert jnp.allclose(y, y_f32_ref, atol=5e-2, rtol=5e-2), \
        "mismatch vs f32 reference"

    print("KERNEL_OK")
</pallas_src>

<mosaic_0001>
module attributes {stable_mosaic.version = 11 : i64} {
  func.func @_gram_kernel(%arg0: i32, %arg1: i32, %arg2: i32, %arg3: memref<4xf32, #tpu.memory_space<smem>>, %arg4: memref<8x16xf32, #tpu.memory_space<vmem>>, %arg5: memref<64x32xbf16, #tpu.memory_space<vmem>>, %arg6: memref<8x32xf32, #tpu.memory_space<vmem>>, %arg7: memref<8x64xbf16, #tpu.memory_space<vmem>>) attributes {dimension_semantics = [#tpu.dimension_semantics<parallel>, #tpu.dimension_semantics<arbitrary>, #tpu.dimension_semantics<arbitrary>], iteration_bounds = array<i64: 1, 1, 1>, scalar_prefetch = 0 : i64, scratch_operands = 1 : i64, tpu.core_type = #tpu.core_type<tc>, window_params = [{transform_indices = @transform_0, window_bounds = array<i64: 4>}, {transform_indices = @transform_1, window_bounds = array<i64: 8, 16>}, {transform_indices = @transform_2, window_bounds = array<i64: 64, 32>}, {transform_indices = @transform_3, window_bounds = array<i64: 8, 32>}]} {
    %c0_i32 = arith.constant 0 : i32
    %0 = arith.cmpi eq, %arg1, %c0_i32 : i32
    %c0_i32_0 = arith.constant 0 : i32
    %1 = arith.cmpi eq, %arg2, %c0_i32_0 : i32
    %2 = arith.andi %0, %1 : i1
    %3 = arith.extui %2 : i1 to i32
    %c0_i32_1 = arith.constant 0 : i32
    %4 = arith.cmpi ne, %3, %c0_i32_1 : i32
    scf.if %4 {
      %c0_11 = arith.constant 0 : index
      %c0_12 = arith.constant 0 : index
      %14 = vector.load %arg4[%c0_11, %c0_12] : memref<8x16xf32, #tpu.memory_space<vmem>>, vector<8x16xf32>
      %15 = math.tanh %14 : vector<8x16xf32>
      %cst_13 = arith.constant 1.000000e+00 : f32
      %16 = vector.broadcast %cst_13 : f32 to vector<8x16xf32>
      %17 = arith.truncf %16 : vector<8x16xf32> to vector<8x16xbf16>
      %c0_14 = arith.constant 0 : index
      %c0_15 = arith.constant 0 : index
      %18 = vector.load %arg7[%c0_14, %c0_15] : memref<8x64xbf16, #tpu.memory_space<vmem>>, vector<8x16xbf16>
      tpu.vector_store %arg7[%c0_14, %c0_15], %17 {strides = array<i32>} : memref<8x64xbf16, #tpu.memory_space<vmem>>, vector<8x16xbf16>,
      %19 = arith.truncf %15 : vector<8x16xf32> to vector<8x16xbf16>
      %c0_16 = arith.constant 0 : index
      %c16 = arith.constant 16 : index
      %20 = vector.load %arg7[%c0_16, %c16] : memref<8x64xbf16, #tpu.memory_space<vmem>>, vector<8x16xbf16>
      tpu.vector_store %arg7[%c0_16, %c16], %19 {strides = array<i32>} : memref<8x64xbf16, #tpu.memory_space<vmem>>, vector<8x16xbf16>,
      %c1 = arith.constant 1 : index
      %21 = memref.load %arg3[%c1] : memref<4xf32, #tpu.memory_space<smem>>
      %22 = arith.mulf %15, %15 : vector<8x16xf32>
      %23 = vector.broadcast %21 : f32 to vector<8x16xf32>
      %24 = arith.mulf %23, %16 : vector<8x16xf32>
      %25 = arith.subf %22, %24 : vector<8x16xf32>
      %26 = arith.truncf %25 : vector<8x16xf32> to vector<8x16xbf16>
      %c0_17 = arith.constant 0 : index
      %c32 = arith.constant 32 : index
      %27 = vector.load %arg7[%c0_17, %c32] : memref<8x64xbf16, #tpu.memory_space<vmem>>, vector<8x16xbf16>
      tpu.vector_store %arg7[%c0_17, %c32], %26 {strides = array<i32>} : memref<8x64xbf16, #tpu.memory_space<vmem>>, vector<8x16xbf16>,
      %c2 = arith.constant 2 : index
      %28 = memref.load %arg3[%c2] : memref<4xf32, #tpu.memory_space<smem>>
      %29 = arith.mulf %15, %25 : vector<8x16xf32>
      %30 = vector.broadcast %28 : f32 to vector<8x16xf32>
      %31 = arith.mulf %30, %15 : vector<8x16xf32>
      %32 = arith.subf %29, %31 : vector<8x16xf32>
      %33 = arith.truncf %32 : vector<8x16xf32> to vector<8x16xbf16>
      %c0_18 = arith.constant 0 : index
      %c48 = arith.constant 48 : index
      %34 = vector.load %arg7[%c0_18, %c48] : memref<8x64xbf16, #tpu.memory_space<vmem>>, vector<8x16xbf16>
      tpu.vector_store %arg7[%c0_18, %c48], %33 {strides = array<i32>} : memref<8x64xbf16, #tpu.memory_space<vmem>>, vector<8x16xbf16>,
    } else {
    }
    %c0_i32_2 = arith.constant 0 : i32
    %5 = arith.cmpi eq, %arg2, %c0_i32_2 : i32
    %6 = arith.extui %5 : i1 to i32
    %c0_i32_3 = arith.constant 0 : i32
    %7 = arith.cmpi ne, %6, %c0_i32_3 : i32
    scf.if %7 {
      %cst_11 = arith.constant 0.000000e+00 : f32
      %14 = vector.broadcast %cst_11 : f32 to vector<8x32xf32>
      %c0_12 = arith.constant 0 : index
      %c0_13 = arith.constant 0 : index
      %15 = vector.load %arg6[%c0_12, %c0_13] : memref<8x32xf32, #tpu.memory_space<vmem>>, vector<8x32xf32>
      tpu.vector_store %arg6[%c0_12, %c0_13], %14 {strides = array<i32>} : memref<8x32xf32, #tpu.memory_space<vmem>>, vector<8x32xf32>,
    } else {
    }
    %c0 = arith.constant 0 : index
    %c0_4 = arith.constant 0 : index
    %8 = vector.load %arg7[%c0, %c0_4] : memref<8x64xbf16, #tpu.memory_space<vmem>>, vector<8x64xbf16>
    %c0_5 = arith.constant 0 : index
    %c0_6 = arith.constant 0 : index
    %9 = vector.load %arg6[%c0_5, %c0_6] : memref<8x32xf32, #tpu.memory_space<vmem>>, vector<8x32xf32>
    %c0_7 = arith.constant 0 : index
    %c0_8 = arith.constant 0 : index
    %10 = vector.load %arg5[%c0_7, %c0_8] : memref<64x32xbf16, #tpu.memory_space<vmem>>, vector<64x32xbf16>
    %cst = arith.constant dense<0.000000e+00> : vector<8x32xf32>
    %11 = tpu.matmul %8, %10, %cst {dimension_numbers = #tpu.dot_dimension_numbers<[1], [0], [0], [1], [0, 0, 1, 1], [], []>} : vector<8x64xbf16>, vector<64x32xbf16>, vector<8x32xf32> -> vector<8x32xf32>
    %12 = arith.addf %9, %11 : vector<8x32xf32>
    %c0_9 = arith.constant 0 : index
    %c0_10 = arith.constant 0 : index
    %13 = vector.load %arg6[%c0_9, %c0_10] : memref<8x32xf32, #tpu.memory_space<vmem>>, vector<8x32xf32>
    tpu.vector_store %arg6[%c0_9, %c0_10], %12 {strides = array<i32>} : memref<8x32xf32, #tpu.memory_space<vmem>>, vector<8x32xf32>,
    return
  }
  func.func @transform_0(%arg0: i32, %arg1: i32, %arg2: i32) -> i32 {
    %c0_i32 = arith.constant 0 : i32
    %c0_i32_0 = arith.constant 0 : i32
    return %c0_i32 : i32
  }
  func.func @transform_1(%arg0: i32, %arg1: i32, %arg2: i32) -> (i32, i32) {
    %c0_i32 = arith.constant 0 : i32
    %c0_i32_0 = arith.constant 0 : i32
    return %arg0, %c0_i32 : i32, i32
  }
  func.func @transform_2(%arg0: i32, %arg1: i32, %arg2: i32) -> (i32, i32) {
    %c0_i32 = arith.constant 0 : i32
    return %arg2, %arg1 : i32, i32
  }
  func.func @transform_3(%arg0: i32, %arg1: i32, %arg2: i32) -> (i32, i32) {
    %c0_i32 = arith.constant 0 : i32
    return %arg0, %arg1 : i32, i32
  }
}

</mosaic_0001>

<llo_original>
// kernel: tpu_custom_call.1
$region0: #{tpu_custom_call.1}
  #allocation0 [shape = 'u32[]', space=smem, size = 0x4, offset = 0x4, fixed_abs, tag = 'smem constant byte address 0x4 - core index']
  #allocation1 [shape = 'u32[144,128]{1,0:T(1,128)}', space=vmem, size = 0x12000, scoped, tag = 'internal scratch']
  #allocation2 [shape = 'bf16[8,64]{1,0:T(8,128)(2,1)}', space=vmem, size = 0x800, scoped, tag = 'scratch operand']
  %s0 = inlined_call_operand.vmem [shape: f32[4], index: 0, kind: input, shape index: {}]
  %s1 = inlined_call_operand.vmem [shape: f32[8,16], index: 1, kind: input, shape index: {}]
  %s2 = inlined_call_operand.vmem [shape: bf16[64,32], index: 2, kind: input, shape index: {}]
  %s3 = inlined_call_operand.hbm [shape: f32[8,32], index: 3, kind: output, shape index: {}]
  %s4 = sld [smem:[#allocation0]]
  $region34: #{tpu_custom_call.1} parent=0
    _
  %s6 = ssub.s32 1, %s4
  %s7 = scalar_select 0, %s6, %s4
  $region1: #{tpu_custom_call.1} parent=0
    #allocation3 [shape = 'u8[512]{0}', space=smem, size = 0x200, scoped, tag = 'input window, operand 0, single buffered']
    #allocation4 [shape = 's32[1]{0}', space=sflag, size = 0x4, scoped, tag = 'scoped memory for tpu_custom_call.1']
    #allocation5 [shape = 's32[1]{0}', space=sflag, size = 0x4, scoped, tag = 'scoped memory for tpu_custom_call.1']
    #allocation6 [shape = 'u8[4096]{0}', space=vmem, size = 0x1000, scoped, tag = 'output window, operand 0, single buffered']
    %8 = vsyncpa [#allocation5], 0
    %9 = vsyncpa [#allocation4], 0
    // Predicated region
    $region2: #{tpu_custom_call.1} parent=1 // pred_check
      _
    $region3: #{tpu_custom_call.1} parent=1 // pred_check_branch
      %11 = sbr.rel (0) target = $region5
    $region4: #{tpu_custom_call.1} parent=1 // pred_region
      %s13 = ssub.s32 16, 16
      %14 = vsyncadd [#allocation5], %s13
      %s16 = sshll.u32 %s0, 4
      %s17 = int_to_ptr.vmem [resolvable:$true] %s16
      %19 = dma.vmem_to_smem %s17, 16, [#allocation3], [#allocation5]
    $region5: #{tpu_custom_call.1} parent=1 // pred_fallthru
      _
    // Predicated region
    $region6: #{tpu_custom_call.1} parent=1 // pred_check
      _
    $region7: #{tpu_custom_call.1} parent=1 // pred_check_branch
      %21 = sbr.rel (0) target = $region9
    $region8: #{tpu_custom_call.1} parent=1 // pred_region
      _
    $region9: #{tpu_custom_call.1} parent=1 // pred_fallthru
      _
    // Predicated region
    $region10: #{tpu_custom_call.1} parent=1 // pred_check
      _
    $region11: #{tpu_custom_call.1} parent=1 // pred_check_branch
      %23 = sbr.rel (0) target = $region13
    $region12: #{tpu_custom_call.1} parent=1 // pred_region
      _
    $region13: #{tpu_custom_call.1} parent=1 // pred_fallthru
      _
    // Predicated region
    $region14: #{tpu_custom_call.1} parent=1 // pred_check
      _
    $region15: #{tpu_custom_call.1} parent=1 // pred_check_branch
      %25 = sbr.rel (0) target = $region17
    $region16: #{tpu_custom_call.1} parent=1 // pred_region
      %26 = dma.done [#allocation5], 16
    $region17: #{tpu_custom_call.1} parent=1 // pred_fallthru
      _
    %27 = sfence
    %p30 = scmp.eq.s32.totalorder 0, 0
    %p31 = scmp.eq.s32.totalorder 0, 0
    %p32 = pnand %p30, %p31
    %p33 = pneg %p32
    // Predicated region
    $region18: #{tpu_custom_call.1} parent=1 // pred_check
      _
    $region19: #{tpu_custom_call.1} parent=1 // pred_check_branch
      %35 = sbr.rel (%p32) target = $region21
    $region20: #{tpu_custom_call.1} parent=1 // pred_region
      %v36 = vld [vmem:[%s1] sm:$0xff]
      %v37 = vtanh.pop %v36
      %vm38 = vcmask 125952
      %39 = vst.msk [vmem:[#allocation2] sm:$0xf] %vm38, 1065369472
      %v40 = vpack.c.bf16 %v37, %v37
      %v42 = vunpack.c.l.b16 %v40
      %v43 = vpack.c.b16 %v42, %v42
      %44 = vrot.lane.b32.xlu0 %v43, 16
      %v45 = vpop.permute.xlu0 %44
      %vm47 = vcmask 257152
      %48 = vst.msk [vmem:[#allocation2] sm:$0xf] %vm47, %v45
      %s49 = sld [smem:[#allocation3 + $0x1]]
      %v50 = vmul.f32 %v37, %v37
      %v51 = vstv %s49
      %v52 = vsub.f32 %v50, %v51
      %v53 = vpack.c.bf16 %v52, %v52
      %v55 = vunpack.c.l.b16 %v53
      %v56 = vpack.c.b16 %v55, %v55
      %57 = vrot.lane.b32.xlu0 %v56, 32
      %v58 = vpop.permute.xlu0 %57
      %vm60 = vcmask 388352
      %61 = vst.msk [vmem:[#allocation2] sm:$0xf] %vm60, %v58
      %s62 = sld [smem:[#allocation3 + $0x2]]
      %v63 = vmul.f32 %v37, %v52
      %v64 = vstv %s62
      %v65 = vmul.f32 %v64, %v37
      %v66 = vsub.f32 %v63, %v65
      %v67 = vpack.c.bf16 %v66, %v66
      %v69 = vunpack.c.l.b16 %v67
      %v70 = vpack.c.b16 %v69, %v69
      %71 = vrot.lane.b32.xlu0 %v70, 48
      %v72 = vpop.permute.xlu0 %71
      %vm74 = vcmask 519552
      %75 = vst.msk [vmem:[#allocation2] sm:$0xf] %vm74, %v72
    $region21: #{tpu_custom_call.1} parent=1 // pred_fallthru
      _
    // Predicated region
    $region22: #{tpu_custom_call.1} parent=1 // pred_check
      %p76 = pneg %p31
    $region23: #{tpu_custom_call.1} parent=1 // pred_check_branch
      %78 = sbr.rel (%p76) target = $region25
    $region24: #{tpu_custom_call.1} parent=1 // pred_region
      %vm79 = vcmask 261120
      %80 = vst.msk [vmem:[#allocation6] sm:$0xff] %vm79, 0.0
    $region25: #{tpu_custom_call.1} parent=1 // pred_fallthru
      _
    %v81 = vld [vmem:[#allocation2] sm:$0xf]
    %v82 = vld [vmem:[#allocation6] sm:$0xff]
    %v83 = vld [vmem:[%s2] sm:$0xf]
    %v84 = vld [vmem:[%s2 + $0x4] sm:$0xf]
    %v85 = vld [vmem:[%s2 + $0x8] sm:$0xf]
    %v86 = vld [vmem:[%s2 + $0xc] sm:$0xf]
    %v87 = vld [vmem:[%s2 + $0x10] sm:$0xf]
    %v88 = vld [vmem:[%s2 + $0x14] sm:$0xf]
    %v89 = vld [vmem:[%s2 + $0x18] sm:$0xf]
    %v90 = vld [vmem:[%s2 + $0x1c] sm:$0xf]
    %v99 = vunpack.c.l.b16 %v83
    %v100 = vunpack.c.l.b16 %v84
    %v101 = vunpack.c.l.b16 %v85
    %v102 = vunpack.c.l.b16 %v86
    %v103 = vunpack.c.l.b16 %v87
    %v104 = vunpack.c.l.b16 %v88
    %v105 = vunpack.c.l.b16 %v89
    %v106 = vunpack.c.l.b16 %v90
    %v107 = vpack.c.b16 %v100, %v99
    %v108 = vpack.c.b16 %v102, %v101
    %v109 = vpack.c.b16 %v104, %v103
    %v110 = vpack.c.b16 %v106, %v105
    %vm115 = vcmask 523264
    %v117 = vsel %vm115, %v81, 0
    %119 = vmatprep.subr.bf16.mxu0 0
    %120 = vmatpush1.bf16.msra.mxu0 %v107
    %121 = vmatprep.subr.bf16.mxu0 0
    %122 = vmatpush1.bf16.msra.mxu0 %v108
    %123 = vmatprep.subr.bf16.mxu0 0
    %124 = vmatpush1.bf16.msra.mxu0 %v109
    %125 = vmatprep.subr.bf16.mxu0 0
    %126 = vmatpush1.bf16.msra.mxu0 %v110
    %127 = vmatprep.subr.bf16.mxu0 0
    %128 = vmatpush1.bf16.msra.mxu0 0
    %129 = vmatprep.subr.bf16.mxu0 0
    %130 = vmatpush1.bf16.msra.mxu0 0
    %131 = vmatprep.subr.bf16.mxu0 0
    %132 = vmatpush1.bf16.msra.mxu0 0
    %133 = vmatprep.subr.bf16.mxu0 0
    %134 = vmatpush1.bf16.msra.mxu0 0
    %135 = vmatprep.subr.bf16.mxu0 0
    %136 = vmatpush1.bf16.msra.mxu0 0
    %137 = vmatprep.subr.bf16.mxu0 0
    %138 = vmatpush1.bf16.msra.mxu0 0
    %139 = vmatprep.subr.bf16.mxu0 0
    %140 = vmatpush1.bf16.msra.mxu0 0
    %141 = vmatprep.subr.bf16.mxu0 0
    %142 = vmatpush1.bf16.msra.mxu0 0
    %143 = vmatprep.subr.bf16.mxu0 0
    %144 = vmatpush1.bf16.msra.mxu0 0
    %145 = vmatprep.subr.bf16.mxu0 0
    %146 = vmatpush1.bf16.msra.mxu0 0
    %147 = vmatprep.subr.bf16.mxu0 0
    %148 = vmatpush1.bf16.msra.mxu0 0
    %149 = vmatprep.subr.bf16.mxu0 0
    %150 = vmatpush1.bf16.msra.mxu0 0
    %151 = vmatprep.mubr.bf16.mxu0 0
    %152 = vmatmul.mubr.bf16.gmra.mrb[0].mxu0 %v117
    %v153 = vpop.f32.mrb[0].mxu0
    %v154 = vadd.f32 0.0, %v153
    %v155 = vpop.f32.mrb[0].mxu0
    %v156 = vpop.f32.mrb[0].mxu0
    %v157 = vpop.f32.mrb[0].mxu0
    %158 = vdwg.mxu0
    %v159 = vadd.f32 %v82, %v154
    %vm160 = vcmask 261120
    %161 = vst.msk [vmem:[#allocation6] sm:$0xff] %vm160, %v159
    // Predicated region
    $region26: #{tpu_custom_call.1} parent=1 // pred_check
      _
    $region27: #{tpu_custom_call.1} parent=1 // pred_check_branch
      %163 = sbr.rel (0) target = $region29
    $region28: #{tpu_custom_call.1} parent=1 // pred_region
      %s165 = ssub.s32 128, 128
      %166 = vsyncadd [#allocation4], %s165
      %s168 = sshll.u32 [#allocation6], 4
      %s169 = int_to_ptr.vmem [resolvable:$true] %s168
      %171 = dma.vmem_to_hbm [thread:$0]  %s169, 128, %s3, [#allocation4]
    $region29: #{tpu_custom_call.1} parent=1 // pred_fallthru
      _
    // Predicated region
    $region30: #{tpu_custom_call.1} parent=1 // pred_check
      _
    $region31: #{tpu_custom_call.1} parent=1 // pred_check_branch
      %173 = sbr.rel (0) target = $region33
    $region32: #{tpu_custom_call.1} parent=1 // pred_region
      %174 = dma.done [#allocation4], 128
    $region33: #{tpu_custom_call.1} parent=1 // pred_fallthru
      _
    %175 = vsyncpa [#allocation4], 1
    %176 = vsyncpa [#allocation5], 1

</llo_original>
